<compile_context>
chip_gen: v7x
topology: tpu7x:2x2x1
jax: 0.10.0
libtpu: 0.0.40
codegen_flags: <defaults>
</compile_context>

<pallas_src>
import jax
import jax.numpy as jnp
from jax.experimental import pallas as pl
from jax.experimental.pallas import tpu as pltpu

IN_DIM = 6   # cfg.SOLVER.TYPE == 'TG'  -> in_dim = 6
H1 = 8       # first Linear out features
H2 = 6       # second Linear out features

MAX_TILE = 131072  # lane-tile upper bound (keeps VMEM well under v7x's budget)


def edge_mlp_kernel(xT_ref, w1_ref, b1_ref, w2_ref, b2_ref, oT_ref):
    # xT_ref: (IN_DIM, tile)   w1_ref: (H1, IN_DIM)   b1_ref: (H1, 1)
    # w2_ref: (H2, H1)         b2_ref: (H2, 1)        oT_ref: (H2, tile)
    x = xT_ref[...].astype(jnp.float32)
    w1 = w1_ref[...]
    w2 = w2_ref[...]

    # Layer 1: h = ReLU(W1 @ x + b1), as VPU broadcast-MACs (K=6 would leave
    # the MXU at <5% utilization, and f32 MXU is an emulated multi-pass matmul).
    h = b1_ref[...] + w1[:, 0:1] * x[0:1, :]
    for k in range(1, IN_DIM):
        h = h + w1[:, k:k + 1] * x[k:k + 1, :]
    h = jnp.maximum(h, 0.0)

    # Layer 2: y = ReLU(W2 @ h + b2)
    y = b2_ref[...] + w2[:, 0:1] * h[0:1, :]
    for k in range(1, H1):
        y = y + w2[:, k:k + 1] * h[k:k + 1, :]
    y = jnp.maximum(y, 0.0)

    oT_ref[...] = y.astype(oT_ref.dtype)


def _round_up(v, m):
    return ((v + m - 1) // m) * m


def _pick_tile(n, tn):
    """Lane tile: multiple of 128, big enough to amortize per-step overhead,
    capped to (a) keep >= 2 grid steps when possible (v7x megacore) and
    (b) never exceed the array extent (ragged tail is pipeline-masked)."""
    if n <= 128:
        return n                                        # single full-extent block
    tile = max(128, (min(int(tn), MAX_TILE) // 128) * 128)   # user tn < 128 is clamped up
    tile = min(tile, _round_up(max(n // 2, 1), 128))    # keep >= 2 grid steps
    tile = min(tile, (n // 128) * 128)                  # first block fits the array
    return tile


def edge_feature_encoder_fm(xT, w1, b1, w2, b2, *, tn=65536):
    """Feature-major fast path (recommended calling convention).

    xT: (IN_DIM, N) edge features, edge axis on the lane axis.  Returns (H2, N).
    w1: (H1, IN_DIM), b1: (H1,), w2: (H2, H1), b2: (H2,)  (nn.Linear layout).
    """
    d, n = xT.shape
    assert d == IN_DIM, f"expected {IN_DIM} input features, got {d}"
    tile = _pick_tile(n, tn)

    return pl.pallas_call(
        edge_mlp_kernel,
        out_shape=jax.ShapeDtypeStruct((H2, n), xT.dtype),
        grid_spec=pltpu.PrefetchScalarGridSpec(
            num_scalar_prefetch=0,
            grid=(pl.cdiv(n, tile),),                            # tile over edges
            in_specs=[
                pl.BlockSpec((IN_DIM, tile), lambda i: (0, i)),  # x^T lane tile
                pl.BlockSpec((H1, IN_DIM), lambda i: (0, 0)),    # W1 (resident)
                pl.BlockSpec((H1, 1), lambda i: (0, 0)),         # b1 (resident)
                pl.BlockSpec((H2, H1), lambda i: (0, 0)),        # W2 (resident)
                pl.BlockSpec((H2, 1), lambda i: (0, 0)),         # b2 (resident)
            ],
            out_specs=pl.BlockSpec((H2, tile), lambda i: (0, i)),  # y^T lane tile
        ),
        compiler_params=pltpu.CompilerParams(
            dimension_semantics=("parallel",),    # edge axis shards across v7x's 2 TCs
            vmem_limit_bytes=32 * 1024 * 1024,    # ~14 MiB used at tile=65536 f32
        ),
    )(xT, w1, b1.reshape(H1, 1), w2, b2.reshape(H2, 1))


def edge_feature_encoder(x, w1, b1, w2, b2, *, tn=65536):
    """PyTorch-layout convenience wrapper: x (N, IN_DIM) -> (N, H2).

    The two transposes here are wrapper-side layout plumbing (an extra HBM pass
    each); keep edge features feature-major and call edge_feature_encoder_fm
    directly in performance-critical code.
    """
    return edge_feature_encoder_fm(x.T, w1, b1, w2, b2, tn=tn).T


def init_params(key):
    """Deterministic init mimicking nn.Linear default (uniform +-1/sqrt(fan_in))."""
    k1, k2, k3, k4 = jax.random.split(key, 4)
    bnd1 = 1.0 / jnp.sqrt(IN_DIM)
    bnd2 = 1.0 / jnp.sqrt(H1)
    # PyTorch stores Linear weight as (out, in); kept as-is (kernel uses W @ x^T).
    w1 = jax.random.uniform(k1, (H1, IN_DIM), jnp.float32, -bnd1, bnd1)
    b1 = jax.random.uniform(k2, (H1,), jnp.float32, -bnd1, bnd1)
    w2 = jax.random.uniform(k3, (H2, H1), jnp.float32, -bnd2, bnd2)
    b2 = jax.random.uniform(k4, (H2,), jnp.float32, -bnd2, bnd2)
    return w1, b1, w2, b2


def reference_forward(x, w1, b1, w2, b2):
    h = jnp.maximum(x @ w1.T + b1, 0.0)
    return jnp.maximum(h @ w2.T + b2, 0.0)


if __name__ == "__main__":
    key = jax.random.PRNGKey(0)
    kx, kp, kx2 = jax.random.split(key, 3)
    w1, b1, w2, b2 = init_params(kp)

    # Case 1: small N < 128 (single full-extent block), PyTorch-layout wrapper.
    N = 64
    x = jax.random.normal(kx, (N, IN_DIM), jnp.float32)
    out = jax.block_until_ready(edge_feature_encoder(x, w1, b1, w2, b2))
    ref = reference_forward(x, w1, b1, w2, b2)
    assert out.shape == (N, H2)
    assert jnp.allclose(out, ref, atol=1e-5, rtol=1e-5)

    # Case 2: ragged N with a 2-step grid (exercises the in-kernel tail masking
    # — no wrapper pad copy), feature-major fast path (no transposes).
    N2 = 300
    x2 = jax.random.normal(kx2, (N2, IN_DIM), jnp.float32)
    x2T = x2.T                                    # feature-major convention
    out2T = jax.block_until_ready(edge_feature_encoder_fm(x2T, w1, b1, w2, b2))
    ref2 = reference_forward(x2, w1, b1, w2, b2)
    assert out2T.shape == (H2, N2)
    assert jnp.allclose(out2T.T, ref2, atol=1e-5, rtol=1e-5)

    # Case 3: bf16 edge features end-to-end (halves HBM traffic; compute stays
    # f32 in-register, so only input/output quantization error remains).
    x3T = x2T.astype(jnp.bfloat16)
    out3T = jax.block_until_ready(edge_feature_encoder_fm(x3T, w1, b1, w2, b2))
    assert out3T.shape == (H2, N2) and out3T.dtype == jnp.bfloat16
    assert jnp.allclose(out3T.T.astype(jnp.float32), ref2, atol=3e-2, rtol=3e-2)

    print("KERNEL_OK")
</pallas_src>

<mosaic_0001>
module attributes {stable_mosaic.version = 11 : i64} {
  func.func @edge_mlp_kernel(%arg0: i32, %arg1: memref<6x64xf32, #tpu.memory_space<vmem>>, %arg2: memref<8x6xf32, #tpu.memory_space<vmem>>, %arg3: memref<8x1xf32, #tpu.memory_space<vmem>>, %arg4: memref<6x8xf32, #tpu.memory_space<vmem>>, %arg5: memref<6x1xf32, #tpu.memory_space<vmem>>, %arg6: memref<6x64xf32, #tpu.memory_space<vmem>>) attributes {dimension_semantics = [#tpu.dimension_semantics<parallel>], iteration_bounds = array<i64: 1>, scalar_prefetch = 0 : i64, scratch_operands = 0 : i64, tpu.core_type = #tpu.core_type<tc>, window_params = [{transform_indices = @transform_0, window_bounds = array<i64: 6, 64>}, {pipeline_mode = #tpu.pipeline_mode<synchronous>, transform_indices = @transform_1, window_bounds = array<i64: 8, 6>}, {pipeline_mode = #tpu.pipeline_mode<synchronous>, transform_indices = @transform_2, window_bounds = array<i64: 8, 1>}, {pipeline_mode = #tpu.pipeline_mode<synchronous>, transform_indices = @transform_3, window_bounds = array<i64: 6, 8>}, {pipeline_mode = #tpu.pipeline_mode<synchronous>, transform_indices = @transform_4, window_bounds = array<i64: 6, 1>}, {transform_indices = @transform_5, window_bounds = array<i64: 6, 64>}]} {
    %c0 = arith.constant 0 : index
    %c0_0 = arith.constant 0 : index
    %0 = vector.load %arg1[%c0, %c0_0] : memref<6x64xf32, #tpu.memory_space<vmem>>, vector<6x64xf32>
    %c0_1 = arith.constant 0 : index
    %c0_2 = arith.constant 0 : index
    %1 = vector.load %arg2[%c0_1, %c0_2] : memref<8x6xf32, #tpu.memory_space<vmem>>, vector<8x6xf32>
    %c0_3 = arith.constant 0 : index
    %c0_4 = arith.constant 0 : index
    %2 = vector.load %arg4[%c0_3, %c0_4] : memref<6x8xf32, #tpu.memory_space<vmem>>, vector<6x8xf32>
    %c0_5 = arith.constant 0 : index
    %c0_6 = arith.constant 0 : index
    %3 = vector.load %arg3[%c0_5, %c0_6] : memref<8x1xf32, #tpu.memory_space<vmem>>, vector<8x1xf32>
    %4 = vector.extract_strided_slice %1 {offsets = [0, 0], sizes = [8, 1], strides = [1, 1]} : vector<8x6xf32> to vector<8x1xf32>
    %5 = vector.extract_strided_slice %0 {offsets = [0, 0], sizes = [1, 64], strides = [1, 1]} : vector<6x64xf32> to vector<1x64xf32>
    %6 = vector.broadcast %4 : vector<8x1xf32> to vector<8x64xf32>
    %7 = vector.broadcast %5 : vector<1x64xf32> to vector<8x64xf32>
    %8 = arith.mulf %6, %7 : vector<8x64xf32>
    %9 = vector.broadcast %3 : vector<8x1xf32> to vector<8x64xf32>
    %10 = arith.addf %9, %8 : vector<8x64xf32>
    %11 = vector.extract_strided_slice %1 {offsets = [0, 1], sizes = [8, 1], strides = [1, 1]} : vector<8x6xf32> to vector<8x1xf32>
    %12 = vector.extract_strided_slice %0 {offsets = [1, 0], sizes = [1, 64], strides = [1, 1]} : vector<6x64xf32> to vector<1x64xf32>
    %13 = vector.broadcast %11 : vector<8x1xf32> to vector<8x64xf32>
    %14 = vector.broadcast %12 : vector<1x64xf32> to vector<8x64xf32>
    %15 = arith.mulf %13, %14 : vector<8x64xf32>
    %16 = arith.addf %10, %15 : vector<8x64xf32>
    %17 = vector.extract_strided_slice %1 {offsets = [0, 2], sizes = [8, 1], strides = [1, 1]} : vector<8x6xf32> to vector<8x1xf32>
    %18 = vector.extract_strided_slice %0 {offsets = [2, 0], sizes = [1, 64], strides = [1, 1]} : vector<6x64xf32> to vector<1x64xf32>
    %19 = vector.broadcast %17 : vector<8x1xf32> to vector<8x64xf32>
    %20 = vector.broadcast %18 : vector<1x64xf32> to vector<8x64xf32>
    %21 = arith.mulf %19, %20 : vector<8x64xf32>
    %22 = arith.addf %16, %21 : vector<8x64xf32>
    %23 = vector.extract_strided_slice %1 {offsets = [0, 3], sizes = [8, 1], strides = [1, 1]} : vector<8x6xf32> to vector<8x1xf32>
    %24 = vector.extract_strided_slice %0 {offsets = [3, 0], sizes = [1, 64], strides = [1, 1]} : vector<6x64xf32> to vector<1x64xf32>
    %25 = vector.broadcast %23 : vector<8x1xf32> to vector<8x64xf32>
    %26 = vector.broadcast %24 : vector<1x64xf32> to vector<8x64xf32>
    %27 = arith.mulf %25, %26 : vector<8x64xf32>
    %28 = arith.addf %22, %27 : vector<8x64xf32>
    %29 = vector.extract_strided_slice %1 {offsets = [0, 4], sizes = [8, 1], strides = [1, 1]} : vector<8x6xf32> to vector<8x1xf32>
    %30 = vector.extract_strided_slice %0 {offsets = [4, 0], sizes = [1, 64], strides = [1, 1]} : vector<6x64xf32> to vector<1x64xf32>
    %31 = vector.broadcast %29 : vector<8x1xf32> to vector<8x64xf32>
    %32 = vector.broadcast %30 : vector<1x64xf32> to vector<8x64xf32>
    %33 = arith.mulf %31, %32 : vector<8x64xf32>
    %34 = arith.addf %28, %33 : vector<8x64xf32>
    %35 = vector.extract_strided_slice %1 {offsets = [0, 5], sizes = [8, 1], strides = [1, 1]} : vector<8x6xf32> to vector<8x1xf32>
    %36 = vector.extract_strided_slice %0 {offsets = [5, 0], sizes = [1, 64], strides = [1, 1]} : vector<6x64xf32> to vector<1x64xf32>
    %37 = vector.broadcast %35 : vector<8x1xf32> to vector<8x64xf32>
    %38 = vector.broadcast %36 : vector<1x64xf32> to vector<8x64xf32>
    %39 = arith.mulf %37, %38 : vector<8x64xf32>
    %40 = arith.addf %34, %39 : vector<8x64xf32>
    %cst = arith.constant 0.000000e+00 : f32
    %41 = vector.broadcast %cst : f32 to vector<8x64xf32>
    %42 = arith.maximumf %40, %41 : vector<8x64xf32>
    %c0_7 = arith.constant 0 : index
    %c0_8 = arith.constant 0 : index
    %43 = vector.load %arg5[%c0_7, %c0_8] : memref<6x1xf32, #tpu.memory_space<vmem>>, vector<6x1xf32>
    %44 = vector.extract_strided_slice %2 {offsets = [0, 0], sizes = [6, 1], strides = [1, 1]} : vector<6x8xf32> to vector<6x1xf32>
    %45 = vector.extract_strided_slice %42 {offsets = [0, 0], sizes = [1, 64], strides = [1, 1]} : vector<8x64xf32> to vector<1x64xf32>
    %46 = vector.broadcast %44 : vector<6x1xf32> to vector<6x64xf32>
    %47 = vector.broadcast %45 : vector<1x64xf32> to vector<6x64xf32>
    %48 = arith.mulf %46, %47 : vector<6x64xf32>
    %49 = vector.broadcast %43 : vector<6x1xf32> to vector<6x64xf32>
    %50 = arith.addf %49, %48 : vector<6x64xf32>
    %51 = vector.extract_strided_slice %2 {offsets = [0, 1], sizes = [6, 1], strides = [1, 1]} : vector<6x8xf32> to vector<6x1xf32>
    %52 = vector.extract_strided_slice %42 {offsets = [1, 0], sizes = [1, 64], strides = [1, 1]} : vector<8x64xf32> to vector<1x64xf32>
    %53 = vector.broadcast %51 : vector<6x1xf32> to vector<6x64xf32>
    %54 = vector.broadcast %52 : vector<1x64xf32> to vector<6x64xf32>
    %55 = arith.mulf %53, %54 : vector<6x64xf32>
    %56 = arith.addf %50, %55 : vector<6x64xf32>
    %57 = vector.extract_strided_slice %2 {offsets = [0, 2], sizes = [6, 1], strides = [1, 1]} : vector<6x8xf32> to vector<6x1xf32>
    %58 = vector.extract_strided_slice %42 {offsets = [2, 0], sizes = [1, 64], strides = [1, 1]} : vector<8x64xf32> to vector<1x64xf32>
    %59 = vector.broadcast %57 : vector<6x1xf32> to vector<6x64xf32>
    %60 = vector.broadcast %58 : vector<1x64xf32> to vector<6x64xf32>
    %61 = arith.mulf %59, %60 : vector<6x64xf32>
    %62 = arith.addf %56, %61 : vector<6x64xf32>
    %63 = vector.extract_strided_slice %2 {offsets = [0, 3], sizes = [6, 1], strides = [1, 1]} : vector<6x8xf32> to vector<6x1xf32>
    %64 = vector.extract_strided_slice %42 {offsets = [3, 0], sizes = [1, 64], strides = [1, 1]} : vector<8x64xf32> to vector<1x64xf32>
    %65 = vector.broadcast %63 : vector<6x1xf32> to vector<6x64xf32>
    %66 = vector.broadcast %64 : vector<1x64xf32> to vector<6x64xf32>
    %67 = arith.mulf %65, %66 : vector<6x64xf32>
    %68 = arith.addf %62, %67 : vector<6x64xf32>
    %69 = vector.extract_strided_slice %2 {offsets = [0, 4], sizes = [6, 1], strides = [1, 1]} : vector<6x8xf32> to vector<6x1xf32>
    %70 = vector.extract_strided_slice %42 {offsets = [4, 0], sizes = [1, 64], strides = [1, 1]} : vector<8x64xf32> to vector<1x64xf32>
    %71 = vector.broadcast %69 : vector<6x1xf32> to vector<6x64xf32>
    %72 = vector.broadcast %70 : vector<1x64xf32> to vector<6x64xf32>
    %73 = arith.mulf %71, %72 : vector<6x64xf32>
    %74 = arith.addf %68, %73 : vector<6x64xf32>
    %75 = vector.extract_strided_slice %2 {offsets = [0, 5], sizes = [6, 1], strides = [1, 1]} : vector<6x8xf32> to vector<6x1xf32>
    %76 = vector.extract_strided_slice %42 {offsets = [5, 0], sizes = [1, 64], strides = [1, 1]} : vector<8x64xf32> to vector<1x64xf32>
    %77 = vector.broadcast %75 : vector<6x1xf32> to vector<6x64xf32>
    %78 = vector.broadcast %76 : vector<1x64xf32> to vector<6x64xf32>
    %79 = arith.mulf %77, %78 : vector<6x64xf32>
    %80 = arith.addf %74, %79 : vector<6x64xf32>
    %81 = vector.extract_strided_slice %2 {offsets = [0, 6], sizes = [6, 1], strides = [1, 1]} : vector<6x8xf32> to vector<6x1xf32>
    %82 = vector.extract_strided_slice %42 {offsets = [6, 0], sizes = [1, 64], strides = [1, 1]} : vector<8x64xf32> to vector<1x64xf32>
    %83 = vector.broadcast %81 : vector<6x1xf32> to vector<6x64xf32>
    %84 = vector.broadcast %82 : vector<1x64xf32> to vector<6x64xf32>
    %85 = arith.mulf %83, %84 : vector<6x64xf32>
    %86 = arith.addf %80, %85 : vector<6x64xf32>
    %87 = vector.extract_strided_slice %2 {offsets = [0, 7], sizes = [6, 1], strides = [1, 1]} : vector<6x8xf32> to vector<6x1xf32>
    %88 = vector.extract_strided_slice %42 {offsets = [7, 0], sizes = [1, 64], strides = [1, 1]} : vector<8x64xf32> to vector<1x64xf32>
    %89 = vector.broadcast %87 : vector<6x1xf32> to vector<6x64xf32>
    %90 = vector.broadcast %88 : vector<1x64xf32> to vector<6x64xf32>
    %91 = arith.mulf %89, %90 : vector<6x64xf32>
    %92 = arith.addf %86, %91 : vector<6x64xf32>
    %cst_9 = arith.constant 0.000000e+00 : f32
    %93 = vector.broadcast %cst_9 : f32 to vector<6x64xf32>
    %94 = arith.maximumf %92, %93 : vector<6x64xf32>
    %c0_10 = arith.constant 0 : index
    %c0_11 = arith.constant 0 : index
    %95 = vector.load %arg6[%c0_10, %c0_11] : memref<6x64xf32, #tpu.memory_space<vmem>>, vector<6x64xf32>
    tpu.vector_store %arg6[%c0_10, %c0_11], %94 {strides = array<i32>} : memref<6x64xf32, #tpu.memory_space<vmem>>, vector<6x64xf32>,
    return
  }
  func.func @transform_0(%arg0: i32) -> (i32, i32) {
    %c0_i32 = arith.constant 0 : i32
    %c0_i32_0 = arith.constant 0 : i32
    return %c0_i32, %arg0 : i32, i32
  }
  func.func @transform_1(%arg0: i32) -> (i32, i32) {
    %c0_i32 = arith.constant 0 : i32
    %c0_i32_0 = arith.constant 0 : i32
    %c0_i32_1 = arith.constant 0 : i32
    return %c0_i32, %c0_i32_0 : i32, i32
  }
  func.func @transform_2(%arg0: i32) -> (i32, i32) {
    %c0_i32 = arith.constant 0 : i32
    %c0_i32_0 = arith.constant 0 : i32
    %c0_i32_1 = arith.constant 0 : i32
    return %c0_i32, %c0_i32_0 : i32, i32
  }
  func.func @transform_3(%arg0: i32) -> (i32, i32) {
    %c0_i32 = arith.constant 0 : i32
    %c0_i32_0 = arith.constant 0 : i32
    %c0_i32_1 = arith.constant 0 : i32
    return %c0_i32, %c0_i32_0 : i32, i32
  }
  func.func @transform_4(%arg0: i32) -> (i32, i32) {
    %c0_i32 = arith.constant 0 : i32
    %c0_i32_0 = arith.constant 0 : i32
    %c0_i32_1 = arith.constant 0 : i32
    return %c0_i32, %c0_i32_0 : i32, i32
  }
  func.func @transform_5(%arg0: i32) -> (i32, i32) {
    %c0_i32 = arith.constant 0 : i32
    %c0_i32_0 = arith.constant 0 : i32
    return %c0_i32, %arg0 : i32, i32
  }
}

</mosaic_0001>

<llo_original>
// kernel: tpu_custom_call.1
$region0: #{tpu_custom_call.1}
  #allocation0 [shape = 'u32[]', space=smem, size = 0x4, offset = 0x4, fixed_abs, tag = 'smem constant byte address 0x4 - core index']
  #allocation1 [shape = 'u32[144,128]{1,0:T(1,128)}', space=vmem, size = 0x12000, scoped, tag = 'internal scratch']
  %s0 = inlined_call_operand.vmem [shape: f32[6,64], index: 0, kind: input, shape index: {}]
  %s1 = inlined_call_operand.vmem [shape: f32[8,6], index: 1, kind: input, shape index: {}]
  %s2 = inlined_call_operand.vmem [shape: f32[8,1], index: 2, kind: input, shape index: {}]
  %s3 = inlined_call_operand.vmem [shape: f32[6,8], index: 3, kind: input, shape index: {}]
  %s4 = inlined_call_operand.vmem [shape: f32[6,1], index: 4, kind: input, shape index: {}]
  %s5 = inlined_call_operand.hbm [shape: f32[6,64], index: 5, kind: output, shape index: {}]
  %s6 = sld [smem:[#allocation0]]
  $region30: #{tpu_custom_call.1} parent=0
    _
  %s8 = ssub.s32 1, %s6
  %s9 = scalar_select 0, %s8, %s6
  $region1: #{tpu_custom_call.1} parent=0
    #allocation2 [shape = 'u8[4096]{0}', space=vmem, size = 0x1000, scoped, tag = 'output window, operand 0, single buffered']
    #allocation3 [shape = 's32[1]{0}', space=sflag, size = 0x4, scoped, tag = 'scoped memory for tpu_custom_call.1']
    %10 = vsyncpa [#allocation3], 0
    // Predicated region
    $region2: #{tpu_custom_call.1} parent=1 // pred_check
      _
    $region3: #{tpu_custom_call.1} parent=1 // pred_check_branch
      %12 = sbr.rel (0) target = $region5
    $region4: #{tpu_custom_call.1} parent=1 // pred_region
      _
    $region5: #{tpu_custom_call.1} parent=1 // pred_fallthru
      _
    // Predicated region
    $region6: #{tpu_custom_call.1} parent=1 // pred_check
      _
    $region7: #{tpu_custom_call.1} parent=1 // pred_check_branch
      %14 = sbr.rel (0) target = $region9
    $region8: #{tpu_custom_call.1} parent=1 // pred_region
      _
    $region9: #{tpu_custom_call.1} parent=1 // pred_fallthru
      _
    // Predicated region
    $region10: #{tpu_custom_call.1} parent=1 // pred_check
      _
    $region11: #{tpu_custom_call.1} parent=1 // pred_check_branch
      %16 = sbr.rel (0) target = $region13
    $region12: #{tpu_custom_call.1} parent=1 // pred_region
      _
    $region13: #{tpu_custom_call.1} parent=1 // pred_fallthru
      _
    // Predicated region
    $region14: #{tpu_custom_call.1} parent=1 // pred_check
      _
    $region15: #{tpu_custom_call.1} parent=1 // pred_check_branch
      %18 = sbr.rel (0) target = $region17
    $region16: #{tpu_custom_call.1} parent=1 // pred_region
      _
    $region17: #{tpu_custom_call.1} parent=1 // pred_fallthru
      _
    // Predicated region
    $region18: #{tpu_custom_call.1} parent=1 // pred_check
      _
    $region19: #{tpu_custom_call.1} parent=1 // pred_check_branch
      %20 = sbr.rel (0) target = $region21
    $region20: #{tpu_custom_call.1} parent=1 // pred_region
      _
    $region21: #{tpu_custom_call.1} parent=1 // pred_fallthru
      _
    %v21 = vld [vmem:[%s0] sm:$0x3f]
    %v22 = vld [vmem:[%s1] sm:$0xff]
    %v23 = vld [vmem:[%s3] sm:$0x3f]
    %v24 = vld [vmem:[%s2] sm:$0xff]
    %26 = vset.pattern.permute.xlu0 0
    %27 = vperm.xlu0 %26, %v22
    %v28 = vpop.permute.xlu0 %27
    %v30 = vlaneseq
    %v31 = vshrl.u32 %v30, 7
    %v32 = vsub.s32 0, %v31
    %v33 = vrot.slane %v21, %v32
    %v34 = vmul.f32 %v28, %v33
    %36 = vset.pattern.permute.xlu0 0
    %37 = vperm.xlu0 %36, %v24
    %v38 = vpop.permute.xlu0 %37
    %v40 = vadd.f32 %v38, %v34
    %41 = vset.pattern.permute.xlu0 1
    %42 = vperm.xlu0 %41, %v22
    %v43 = vpop.permute.xlu0 %42
    %v45 = vlaneseq
    %v46 = vshrl.u32 %v45, 7
    %v47 = vsub.s32 1, %v46
    %v48 = vrot.slane %v21, %v47
    %v49 = vmul.f32 %v43, %v48
    %v50 = vadd.f32 %v40, %v49
    %51 = vset.pattern.permute.xlu0 2
    %52 = vperm.xlu0 %51, %v22
    %v53 = vpop.permute.xlu0 %52
    %v55 = vlaneseq
    %v56 = vshrl.u32 %v55, 7
    %v57 = vsub.s32 2, %v56
    %v58 = vrot.slane %v21, %v57
    %v59 = vmul.f32 %v53, %v58
    %v60 = vadd.f32 %v50, %v59
    %61 = vset.pattern.permute.xlu0 3
    %62 = vperm.xlu0 %61, %v22
    %v63 = vpop.permute.xlu0 %62
    %v65 = vlaneseq
    %v66 = vshrl.u32 %v65, 7
    %v67 = vsub.s32 3, %v66
    %v68 = vrot.slane %v21, %v67
    %v69 = vmul.f32 %v63, %v68
    %v70 = vadd.f32 %v60, %v69
    %71 = vset.pattern.permute.xlu0 4
    %72 = vperm.xlu0 %71, %v22
    %v73 = vpop.permute.xlu0 %72
    %v75 = vlaneseq
    %v76 = vshrl.u32 %v75, 7
    %v77 = vsub.s32 4, %v76
    %v78 = vrot.slane %v21, %v77
    %v79 = vmul.f32 %v73, %v78
    %v80 = vadd.f32 %v70, %v79
    %81 = vset.pattern.permute.xlu0 5
    %82 = vperm.xlu0 %81, %v22
    %v83 = vpop.permute.xlu0 %82
    %v85 = vlaneseq
    %v86 = vshrl.u32 %v85, 7
    %v87 = vsub.s32 5, %v86
    %v88 = vrot.slane %v21, %v87
    %v89 = vmul.f32 %v83, %v88
    %v90 = vadd.f32 %v80, %v89
    %v91 = vmax.f32 %v90, 0.0
    %v92 = vld [vmem:[%s4] sm:$0x3f]
    %94 = vset.pattern.permute.xlu0 0
    %95 = vperm.xlu0 %94, %v23
    %v96 = vpop.permute.xlu0 %95
    %v98 = vlaneseq
    %v99 = vshrl.u32 %v98, 7
    %v100 = vsub.s32 0, %v99
    %v101 = vrot.slane %v91, %v100
    %v102 = vmul.f32 %v96, %v101
    %104 = vset.pattern.permute.xlu0 0
    %105 = vperm.xlu0 %104, %v92
    %v106 = vpop.permute.xlu0 %105
    %v108 = vadd.f32 %v106, %v102
    %109 = vset.pattern.permute.xlu0 1
    %110 = vperm.xlu0 %109, %v23
    %v111 = vpop.permute.xlu0 %110
    %v113 = vlaneseq
    %v114 = vshrl.u32 %v113, 7
    %v115 = vsub.s32 1, %v114
    %v116 = vrot.slane %v91, %v115
    %v117 = vmul.f32 %v111, %v116
    %v118 = vadd.f32 %v108, %v117
    %119 = vset.pattern.permute.xlu0 2
    %120 = vperm.xlu0 %119, %v23
    %v121 = vpop.permute.xlu0 %120
    %v123 = vlaneseq
    %v124 = vshrl.u32 %v123, 7
    %v125 = vsub.s32 2, %v124
    %v126 = vrot.slane %v91, %v125
    %v127 = vmul.f32 %v121, %v126
    %v128 = vadd.f32 %v118, %v127
    %129 = vset.pattern.permute.xlu0 3
    %130 = vperm.xlu0 %129, %v23
    %v131 = vpop.permute.xlu0 %130
    %v133 = vlaneseq
    %v134 = vshrl.u32 %v133, 7
    %v135 = vsub.s32 3, %v134
    %v136 = vrot.slane %v91, %v135
    %v137 = vmul.f32 %v131, %v136
    %v138 = vadd.f32 %v128, %v137
    %139 = vset.pattern.permute.xlu0 4
    %140 = vperm.xlu0 %139, %v23
    %v141 = vpop.permute.xlu0 %140
    %v143 = vlaneseq
    %v144 = vshrl.u32 %v143, 7
    %v145 = vsub.s32 4, %v144
    %v146 = vrot.slane %v91, %v145
    %v147 = vmul.f32 %v141, %v146
    %v148 = vadd.f32 %v138, %v147
    %149 = vset.pattern.permute.xlu0 5
    %150 = vperm.xlu0 %149, %v23
    %v151 = vpop.permute.xlu0 %150
    %v153 = vlaneseq
    %v154 = vshrl.u32 %v153, 7
    %v155 = vsub.s32 5, %v154
    %v156 = vrot.slane %v91, %v155
    %v157 = vmul.f32 %v151, %v156
    %v158 = vadd.f32 %v148, %v157
    %159 = vset.pattern.permute.xlu0 6
    %160 = vperm.xlu0 %159, %v23
    %v161 = vpop.permute.xlu0 %160
    %v163 = vlaneseq
    %v164 = vshrl.u32 %v163, 7
    %v165 = vsub.s32 6, %v164
    %v166 = vrot.slane %v91, %v165
    %v167 = vmul.f32 %v161, %v166
    %v168 = vadd.f32 %v158, %v167
    %169 = vset.pattern.permute.xlu0 7
    %170 = vperm.xlu0 %169, %v23
    %v171 = vpop.permute.xlu0 %170
    %v173 = vlaneseq
    %v174 = vshrl.u32 %v173, 7
    %v175 = vsub.s32 7, %v174
    %v176 = vrot.slane %v91, %v175
    %v177 = vmul.f32 %v171, %v176
    %v178 = vadd.f32 %v168, %v177
    %v179 = vmax.f32 %v178, 0.0
    %vm180 = vcmask 521216
    %181 = vst.msk [vmem:[#allocation2] sm:$0x3f] %vm180, %v179
    // Predicated region
    $region22: #{tpu_custom_call.1} parent=1 // pred_check
      _
    $region23: #{tpu_custom_call.1} parent=1 // pred_check_branch
      %183 = sbr.rel (0) target = $region25
    $region24: #{tpu_custom_call.1} parent=1 // pred_region
      %s185 = ssub.s32 128, 128
      %186 = vsyncadd [#allocation3], %s185
      %s188 = sshll.u32 [#allocation2], 4
      %s189 = int_to_ptr.vmem [resolvable:$true] %s188
      %191 = dma.vmem_to_hbm [thread:$0]  %s189, 128, %s5, [#allocation3]
    $region25: #{tpu_custom_call.1} parent=1 // pred_fallthru
      _
    // Predicated region
    $region26: #{tpu_custom_call.1} parent=1 // pred_check
      _
    $region27: #{tpu_custom_call.1} parent=1 // pred_check_branch
      %193 = sbr.rel (0) target = $region29
    $region28: #{tpu_custom_call.1} parent=1 // pred_region
      %194 = dma.done [#allocation3], 128
    $region29: #{tpu_custom_call.1} parent=1 // pred_fallthru
      _
    %195 = vsyncpa [#allocation3], 1

</llo_original>
